<compile_context>
chip_gen: v7x
topology: tpu7x:2x2x1
jax: 0.10.0
libtpu: 0.0.40
codegen_flags: <defaults>
</compile_context>

<pallas_src>
import jax
import jax.numpy as jnp
from jax.experimental import pallas as pl
from jax.experimental.pallas import tpu as pltpu


def _mlp_tanh_kernel(x_ref, w1_ref, b1_ref, w23_ref, b23_ref, o_ref):
    # DMA stays in the source dtype; feed the MXU bf16 operands for the big
    # matmul (w1 is already bf16), accumulate in f32.
    x = x_ref[...]                                                   # (TM, 320)
    if x.dtype != jnp.bfloat16:
        x = x.astype(jnp.bfloat16)
    # linear_1 + tanh
    h1 = jnp.dot(x, w1_ref[...], preferred_element_type=jnp.float32) + b1_ref[...]
    h1 = jnp.tanh(h1)                                                # (TM, 64) f32
    # fused linear_2 @ linear_3 (no activation between them) + final tanh.
    # 32x fewer MACs than the first matmul -> keep it f32 for accuracy.
    h3 = jnp.dot(h1, w23_ref[...], preferred_element_type=jnp.float32) + b23_ref[...]
    o_ref[...] = jnp.tanh(h3)                                        # (TM, 10)


def model_tanh_forward(x, w1, b1, w2, b2, w3, b3, *, tm_max=4096):
    """x: (B, S, 8, 8, 5) any real dtype. Returns (B, S, 10) float32.

    Weights are stored transposed vs. PyTorch, i.e. (in, out); biases as (1, out).
    """
    B, S = x.shape[0], x.shape[1]
    feat = x.shape[2] * x.shape[3] * x.shape[4]                      # 8*8*5 = 320
    hidden = 64
    n_out = 10
    M = B * S
    x2 = x.reshape(M, feat)                                          # Flatten(start_dim=2)

    # Algebraic fusion of linear_2 / linear_3 (exact up to f32 reassociation).
    w3f = w3.astype(jnp.float32)
    w23 = w2.astype(jnp.float32) @ w3f                               # (64, 10) f32
    b23 = b2.astype(jnp.float32) @ w3f + b3.astype(jnp.float32)      # (1, 10)  f32
    w1bf = w1.astype(jnp.bfloat16)                                   # bf16 MXU operand
    b1f = b1.astype(jnp.float32)

    # Row-tile selection.
    #  * TM must be a multiple of 8 or equal the full row extent.
    #  * If everything fits in one tile, still split into >= 2 tiles so the
    #    "parallel" grid axis gives both v7x TensorCores work.
    assert tm_max % 8 == 0
    if M <= tm_max:
        if M > 8:
            TM = min(M, ((pl.cdiv(M, 2) + 7) // 8) * 8)              # multiple of 8
        else:
            TM = M                                                   # == full dim
    else:
        TM = tm_max
    grid = (pl.cdiv(M, TM),)

    # Explicit scoped-VMEM limit: TM=4096 f32 x double-buffer is ~10 MiB plus
    # in-kernel temps; 40 MiB covers it on every generation and stays well
    # under v7x's 64 MiB physical VMEM.
    vmem_limit = 40 << 20

    flops = 2 * M * (feat * hidden + hidden * n_out)
    transcendentals = M * (hidden + n_out)
    bytes_accessed = (M * feat * x2.dtype.itemsize                   # x read
                      + M * n_out * 4                                # output write
                      + feat * hidden * 2                            # w1 (bf16)
                      + (hidden + hidden * n_out + n_out) * 4)       # b1, w23, b23

    out = pl.pallas_call(
        _mlp_tanh_kernel,
        out_shape=jax.ShapeDtypeStruct((M, n_out), jnp.float32),
        grid=grid,
        in_specs=[
            pl.BlockSpec((TM, feat), lambda i: (i, 0)),              # x tile (pipelined)
            pl.BlockSpec((feat, hidden), lambda i: (0, 0)),          # w1 (resident, bf16)
            pl.BlockSpec((1, hidden), lambda i: (0, 0)),             # b1
            pl.BlockSpec((hidden, n_out), lambda i: (0, 0)),         # w23
            pl.BlockSpec((1, n_out), lambda i: (0, 0)),              # b23
        ],
        out_specs=pl.BlockSpec((TM, n_out), lambda i: (i, 0)),
        compiler_params=pltpu.CompilerParams(
            dimension_semantics=("parallel",),
            vmem_limit_bytes=vmem_limit),
        cost_estimate=pl.CostEstimate(
            flops=flops,
            transcendentals=transcendentals,
            bytes_accessed=bytes_accessed),
    )(x2, w1bf, b1f, w23, b23)

    return out.reshape(B, S, n_out)


def init_params(key):
    """Deterministic init matching PyTorch Linear shapes (stored as (in, out))."""
    k1, k2, k3, k4, k5, k6 = jax.random.split(key, 6)

    def uniform(k, shape, fan_in):
        bound = 1.0 / jnp.sqrt(jnp.float32(fan_in))
        return jax.random.uniform(k, shape, jnp.float32, -bound, bound)

    w1 = uniform(k1, (320, 64), 320)
    b1 = uniform(k2, (1, 64), 320)
    w2 = uniform(k3, (64, 64), 64)
    b2 = uniform(k4, (1, 64), 64)
    w3 = uniform(k5, (64, 10), 64)
    b3 = uniform(k6, (1, 10), 64)
    return w1, b1, w2, b2, w3, b3


def _reference(x, w1, b1, w2, b2, w3, b3):
    """Pure-JAX f32 reference matching the PyTorch forward exactly."""
    B, S = x.shape[0], x.shape[1]
    xr = x.astype(jnp.float32).reshape(B * S, 320)
    h = jnp.tanh(xr @ w1 + b1)
    h = h @ w2 + b2
    h = jnp.tanh(h @ w3 + b3)
    return h.reshape(B, S, 10)


if __name__ == "__main__":
    key = jax.random.PRNGKey(0)
    kx, kx2, kx3, kp = jax.random.split(key, 4)
    params = init_params(kp)

    # Small shape consistent with the module (trailing dims flatten to 320).
    B, S = 2, 4                                       # M = 8 -> single full tile
    x = jax.random.normal(kx, (B, S, 8, 8, 5), dtype=jnp.float32)
    y = jax.block_until_ready(model_tanh_forward(x, *params))
    ref = _reference(x, *params)
    assert y.shape == (B, S, 10) and y.dtype == jnp.float32
    # bf16 operands on the first matmul -> compare at ~bf16 tolerance.
    assert jnp.allclose(y, ref, atol=1e-2, rtol=1e-2)

    # Multi-tile path including a partial final tile (M = 15 -> TM = 8, grid = (2,)).
    B2, S2 = 3, 5
    x2 = jax.random.normal(kx2, (B2, S2, 8, 8, 5), dtype=jnp.float32)
    y2 = jax.block_until_ready(model_tanh_forward(x2, *params))
    ref2 = _reference(x2, *params)
    assert jnp.allclose(y2, ref2, atol=1e-2, rtol=1e-2)

    # bf16-input pass-through path (halves the dominant HBM read in-kernel).
    B3, S3 = 2, 8                                     # M = 16 -> TM = 8, grid = (2,)
    x3 = jax.random.normal(kx3, (B3, S3, 8, 8, 5), dtype=jnp.bfloat16)
    y3 = jax.block_until_ready(model_tanh_forward(x3, *params))
    ref3 = _reference(x3, *params)
    assert jnp.allclose(y3, ref3, atol=3e-2, rtol=3e-2)

    print("KERNEL_OK")
</pallas_src>

<mosaic_0001>
module attributes {stable_mosaic.version = 11 : i64} {
  func.func @_mlp_tanh_kernel(%arg0: i32, %arg1: memref<8x320xf32, #tpu.memory_space<vmem>>, %arg2: memref<320x64xbf16, #tpu.memory_space<vmem>>, %arg3: memref<1x64xf32, #tpu.memory_space<vmem>>, %arg4: memref<64x10xf32, #tpu.memory_space<vmem>>, %arg5: memref<1x10xf32, #tpu.memory_space<vmem>>, %arg6: memref<8x10xf32, #tpu.memory_space<vmem>>) attributes {dimension_semantics = [#tpu.dimension_semantics<parallel>], iteration_bounds = array<i64: 1>, scalar_prefetch = 0 : i64, scratch_operands = 0 : i64, tpu.core_type = #tpu.core_type<tc>, window_params = [{transform_indices = @transform_0, window_bounds = array<i64: 8, 320>}, {pipeline_mode = #tpu.pipeline_mode<synchronous>, transform_indices = @transform_1, window_bounds = array<i64: 320, 64>}, {pipeline_mode = #tpu.pipeline_mode<synchronous>, transform_indices = @transform_2, window_bounds = array<i64: 1, 64>}, {pipeline_mode = #tpu.pipeline_mode<synchronous>, transform_indices = @transform_3, window_bounds = array<i64: 64, 10>}, {pipeline_mode = #tpu.pipeline_mode<synchronous>, transform_indices = @transform_4, window_bounds = array<i64: 1, 10>}, {transform_indices = @transform_5, window_bounds = array<i64: 8, 10>}]} {
    %c0 = arith.constant 0 : index
    %c0_0 = arith.constant 0 : index
    %0 = vector.load %arg1[%c0, %c0_0] : memref<8x320xf32, #tpu.memory_space<vmem>>, vector<8x320xf32>
    %1 = arith.truncf %0 : vector<8x320xf32> to vector<8x320xbf16>
    %c0_1 = arith.constant 0 : index
    %c0_2 = arith.constant 0 : index
    %2 = vector.load %arg2[%c0_1, %c0_2] : memref<320x64xbf16, #tpu.memory_space<vmem>>, vector<320x64xbf16>
    %cst = arith.constant dense<0.000000e+00> : vector<8x64xf32>
    %3 = tpu.matmul %1, %2, %cst {dimension_numbers = #tpu.dot_dimension_numbers<[1], [0], [0], [1], [0, 0, 1, 1], [], []>} : vector<8x320xbf16>, vector<320x64xbf16>, vector<8x64xf32> -> vector<8x64xf32>
    %c0_3 = arith.constant 0 : index
    %c0_4 = arith.constant 0 : index
    %4 = vector.load %arg3[%c0_3, %c0_4] : memref<1x64xf32, #tpu.memory_space<vmem>>, vector<1x64xf32>
    %5 = vector.broadcast %4 : vector<1x64xf32> to vector<8x64xf32>
    %6 = arith.addf %3, %5 : vector<8x64xf32>
    %7 = math.tanh %6 : vector<8x64xf32>
    %c0_5 = arith.constant 0 : index
    %c0_6 = arith.constant 0 : index
    %8 = vector.load %arg4[%c0_5, %c0_6] : memref<64x10xf32, #tpu.memory_space<vmem>>, vector<64x10xf32>
    %cst_7 = arith.constant dense<0.000000e+00> : vector<8x10xf32>
    %9 = tpu.matmul %7, %8, %cst_7 {dimension_numbers = #tpu.dot_dimension_numbers<[1], [0], [0], [1], [0, 0, 1, 1], [], []>} : vector<8x64xf32>, vector<64x10xf32>, vector<8x10xf32> -> vector<8x10xf32>
    %c0_8 = arith.constant 0 : index
    %c0_9 = arith.constant 0 : index
    %10 = vector.load %arg5[%c0_8, %c0_9] : memref<1x10xf32, #tpu.memory_space<vmem>>, vector<1x10xf32>
    %11 = vector.broadcast %10 : vector<1x10xf32> to vector<8x10xf32>
    %12 = arith.addf %9, %11 : vector<8x10xf32>
    %13 = math.tanh %12 : vector<8x10xf32>
    %c0_10 = arith.constant 0 : index
    %c0_11 = arith.constant 0 : index
    %14 = vector.load %arg6[%c0_10, %c0_11] : memref<8x10xf32, #tpu.memory_space<vmem>>, vector<8x10xf32>
    tpu.vector_store %arg6[%c0_10, %c0_11], %13 {strides = array<i32>} : memref<8x10xf32, #tpu.memory_space<vmem>>, vector<8x10xf32>,
    return
  }
  func.func @transform_0(%arg0: i32) -> (i32, i32) {
    %c0_i32 = arith.constant 0 : i32
    %c0_i32_0 = arith.constant 0 : i32
    return %arg0, %c0_i32 : i32, i32
  }
  func.func @transform_1(%arg0: i32) -> (i32, i32) {
    %c0_i32 = arith.constant 0 : i32
    %c0_i32_0 = arith.constant 0 : i32
    %c0_i32_1 = arith.constant 0 : i32
    return %c0_i32, %c0_i32_0 : i32, i32
  }
  func.func @transform_2(%arg0: i32) -> (i32, i32) {
    %c0_i32 = arith.constant 0 : i32
    %c0_i32_0 = arith.constant 0 : i32
    %c0_i32_1 = arith.constant 0 : i32
    return %c0_i32, %c0_i32_0 : i32, i32
  }
  func.func @transform_3(%arg0: i32) -> (i32, i32) {
    %c0_i32 = arith.constant 0 : i32
    %c0_i32_0 = arith.constant 0 : i32
    %c0_i32_1 = arith.constant 0 : i32
    return %c0_i32, %c0_i32_0 : i32, i32
  }
  func.func @transform_4(%arg0: i32) -> (i32, i32) {
    %c0_i32 = arith.constant 0 : i32
    %c0_i32_0 = arith.constant 0 : i32
    %c0_i32_1 = arith.constant 0 : i32
    return %c0_i32, %c0_i32_0 : i32, i32
  }
  func.func @transform_5(%arg0: i32) -> (i32, i32) {
    %c0_i32 = arith.constant 0 : i32
    %c0_i32_0 = arith.constant 0 : i32
    return %arg0, %c0_i32 : i32, i32
  }
}

</mosaic_0001>

<llo_original>
// kernel: tpu_custom_call.1
$region0: #{tpu_custom_call.1}
  #allocation0 [shape = 'u32[]', space=smem, size = 0x4, offset = 0x4, fixed_abs, tag = 'smem constant byte address 0x4 - core index']
  #allocation1 [shape = 'u32[144,128]{1,0:T(1,128)}', space=vmem, size = 0x12000, scoped, tag = 'internal scratch']
  %s0 = inlined_call_operand.vmem [shape: f32[8,320], index: 0, kind: input, shape index: {}]
  %s1 = inlined_call_operand.vmem [shape: bf16[320,64], index: 1, kind: input, shape index: {}]
  %s2 = inlined_call_operand.vmem [shape: f32[1,64], index: 2, kind: input, shape index: {}]
  %s3 = inlined_call_operand.vmem [shape: f32[64,10], index: 3, kind: input, shape index: {}]
  %s4 = inlined_call_operand.vmem [shape: f32[1,10], index: 4, kind: input, shape index: {}]
  %s5 = inlined_call_operand.hbm [shape: f32[8,10], index: 5, kind: output, shape index: {}]
  %s6 = sld [smem:[#allocation0]]
  $region30: #{tpu_custom_call.1} parent=0
    _
  %s8 = ssub.s32 1, %s6
  %s9 = scalar_select 0, %s8, %s6
  $region1: #{tpu_custom_call.1} parent=0
    #allocation2 [shape = 'u8[4096]{0}', space=vmem, size = 0x1000, scoped, tag = 'output window, operand 0, single buffered']
    #allocation3 [shape = 's32[1]{0}', space=sflag, size = 0x4, scoped, tag = 'scoped memory for tpu_custom_call.1']
    %10 = vsyncpa [#allocation3], 0
    // Predicated region
    $region2: #{tpu_custom_call.1} parent=1 // pred_check
      _
    $region3: #{tpu_custom_call.1} parent=1 // pred_check_branch
      %12 = sbr.rel (0) target = $region5
    $region4: #{tpu_custom_call.1} parent=1 // pred_region
      _
    $region5: #{tpu_custom_call.1} parent=1 // pred_fallthru
      _
    // Predicated region
    $region6: #{tpu_custom_call.1} parent=1 // pred_check
      _
    $region7: #{tpu_custom_call.1} parent=1 // pred_check_branch
      %14 = sbr.rel (0) target = $region9
    $region8: #{tpu_custom_call.1} parent=1 // pred_region
      _
    $region9: #{tpu_custom_call.1} parent=1 // pred_fallthru
      _
    // Predicated region
    $region10: #{tpu_custom_call.1} parent=1 // pred_check
      _
    $region11: #{tpu_custom_call.1} parent=1 // pred_check_branch
      %16 = sbr.rel (0) target = $region13
    $region12: #{tpu_custom_call.1} parent=1 // pred_region
      _
    $region13: #{tpu_custom_call.1} parent=1 // pred_fallthru
      _
    // Predicated region
    $region14: #{tpu_custom_call.1} parent=1 // pred_check
      _
    $region15: #{tpu_custom_call.1} parent=1 // pred_check_branch
      %18 = sbr.rel (0) target = $region17
    $region16: #{tpu_custom_call.1} parent=1 // pred_region
      _
    $region17: #{tpu_custom_call.1} parent=1 // pred_fallthru
      _
    // Predicated region
    $region18: #{tpu_custom_call.1} parent=1 // pred_check
      _
    $region19: #{tpu_custom_call.1} parent=1 // pred_check_branch
      %20 = sbr.rel (0) target = $region21
    $region20: #{tpu_custom_call.1} parent=1 // pred_region
      _
    $region21: #{tpu_custom_call.1} parent=1 // pred_fallthru
      _
    %v22 = vld [vmem:[%s0] sm:$0xff]
    %v23 = vld [vmem:[%s0 + $0x8] sm:$0xff]
    %v24 = vld [vmem:[%s0 + $0x10] sm:$0xff]
    %v25 = vpack.c.bf16 %v22, %v22
    %v26 = vpack.c.bf16 %v23, %v23
    %v27 = vpack.c.bf16 %v24, %v24
    %v28 = vld [vmem:[%s1] sm:$0xf]
    %v29 = vld [vmem:[%s1 + $0x4] sm:$0xf]
    %v30 = vld [vmem:[%s1 + $0x8] sm:$0xf]
    %v31 = vld [vmem:[%s1 + $0xc] sm:$0xf]
    %v32 = vld [vmem:[%s1 + $0x10] sm:$0xf]
    %v33 = vld [vmem:[%s1 + $0x14] sm:$0xf]
    %v34 = vld [vmem:[%s1 + $0x18] sm:$0xf]
    %v35 = vld [vmem:[%s1 + $0x1c] sm:$0xf]
    %v36 = vld [vmem:[%s1 + $0x20] sm:$0xf]
    %v37 = vld [vmem:[%s1 + $0x24] sm:$0xf]
    %v38 = vld [vmem:[%s1 + $0x28] sm:$0xf]
    %v39 = vld [vmem:[%s1 + $0x2c] sm:$0xf]
    %v40 = vld [vmem:[%s1 + $0x30] sm:$0xf]
    %v41 = vld [vmem:[%s1 + $0x34] sm:$0xf]
    %v42 = vld [vmem:[%s1 + $0x38] sm:$0xf]
    %v43 = vld [vmem:[%s1 + $0x3c] sm:$0xf]
    %v44 = vld [vmem:[%s1 + $0x40] sm:$0xf]
    %v45 = vld [vmem:[%s1 + $0x44] sm:$0xf]
    %v46 = vld [vmem:[%s1 + $0x48] sm:$0xf]
    %v47 = vld [vmem:[%s1 + $0x4c] sm:$0xf]
    %v48 = vld [vmem:[%s1 + $0x50] sm:$0xf]
    %v49 = vld [vmem:[%s1 + $0x54] sm:$0xf]
    %v50 = vld [vmem:[%s1 + $0x58] sm:$0xf]
    %v51 = vld [vmem:[%s1 + $0x5c] sm:$0xf]
    %v52 = vld [vmem:[%s1 + $0x60] sm:$0xf]
    %v53 = vld [vmem:[%s1 + $0x64] sm:$0xf]
    %v54 = vld [vmem:[%s1 + $0x68] sm:$0xf]
    %v55 = vld [vmem:[%s1 + $0x6c] sm:$0xf]
    %v56 = vld [vmem:[%s1 + $0x70] sm:$0xf]
    %v57 = vld [vmem:[%s1 + $0x74] sm:$0xf]
    %v58 = vld [vmem:[%s1 + $0x78] sm:$0xf]
    %v59 = vld [vmem:[%s1 + $0x7c] sm:$0xf]
    %v60 = vld [vmem:[%s1 + $0x80] sm:$0xf]
    %v61 = vld [vmem:[%s1 + $0x84] sm:$0xf]
    %v62 = vld [vmem:[%s1 + $0x88] sm:$0xf]
    %v63 = vld [vmem:[%s1 + $0x8c] sm:$0xf]
    %v64 = vld [vmem:[%s1 + $0x90] sm:$0xf]
    %v65 = vld [vmem:[%s1 + $0x94] sm:$0xf]
    %v66 = vld [vmem:[%s1 + $0x98] sm:$0xf]
    %v67 = vld [vmem:[%s1 + $0x9c] sm:$0xf]
    %v68 = vld [vmem:[%s2] sm:$0x1]
    %v70 = vlaneseq
    %v71 = vshrl.u32 %v70, 7
    %v72 = vsub.s32 0, %v71
    %v73 = vrot.slane %v68, %v72
    %v115 = vunpack.c.l.b16 %v28
    %v116 = vunpack.c.l.b16 %v29
    %v117 = vunpack.c.l.b16 %v30
    %v118 = vunpack.c.l.b16 %v31
    %v119 = vunpack.c.l.b16 %v32
    %v120 = vunpack.c.l.b16 %v33
    %v121 = vunpack.c.l.b16 %v34
    %v122 = vunpack.c.l.b16 %v35
    %v123 = vunpack.c.l.b16 %v36
    %v124 = vunpack.c.l.b16 %v37
    %v125 = vunpack.c.l.b16 %v38
    %v126 = vunpack.c.l.b16 %v39
    %v127 = vunpack.c.l.b16 %v40
    %v128 = vunpack.c.l.b16 %v41
    %v129 = vunpack.c.l.b16 %v42
    %v130 = vunpack.c.l.b16 %v43
    %v131 = vunpack.c.l.b16 %v44
    %v132 = vunpack.c.l.b16 %v45
    %v133 = vunpack.c.l.b16 %v46
    %v134 = vunpack.c.l.b16 %v47
    %v135 = vunpack.c.l.b16 %v48
    %v136 = vunpack.c.l.b16 %v49
    %v137 = vunpack.c.l.b16 %v50
    %v138 = vunpack.c.l.b16 %v51
    %v139 = vunpack.c.l.b16 %v52
    %v140 = vunpack.c.l.b16 %v53
    %v141 = vunpack.c.l.b16 %v54
    %v142 = vunpack.c.l.b16 %v55
    %v143 = vunpack.c.l.b16 %v56
    %v144 = vunpack.c.l.b16 %v57
    %v145 = vunpack.c.l.b16 %v58
    %v146 = vunpack.c.l.b16 %v59
    %v147 = vunpack.c.l.b16 %v60
    %v148 = vunpack.c.l.b16 %v61
    %v149 = vunpack.c.l.b16 %v62
    %v150 = vunpack.c.l.b16 %v63
    %v151 = vunpack.c.l.b16 %v64
    %v152 = vunpack.c.l.b16 %v65
    %v153 = vunpack.c.l.b16 %v66
    %v154 = vunpack.c.l.b16 %v67
    %v155 = vpack.c.b16 %v116, %v115
    %v156 = vpack.c.b16 %v118, %v117
    %v157 = vpack.c.b16 %v120, %v119
    %v158 = vpack.c.b16 %v122, %v121
    %v159 = vpack.c.b16 %v124, %v123
    %v160 = vpack.c.b16 %v126, %v125
    %v161 = vpack.c.b16 %v128, %v127
    %v162 = vpack.c.b16 %v130, %v129
    %v163 = vpack.c.b16 %v132, %v131
    %v164 = vpack.c.b16 %v134, %v133
    %v165 = vpack.c.b16 %v136, %v135
    %v166 = vpack.c.b16 %v138, %v137
    %v167 = vpack.c.b16 %v140, %v139
    %v168 = vpack.c.b16 %v142, %v141
    %v169 = vpack.c.b16 %v144, %v143
    %v170 = vpack.c.b16 %v146, %v145
    %v171 = vpack.c.b16 %v148, %v147
    %v172 = vpack.c.b16 %v150, %v149
    %v173 = vpack.c.b16 %v152, %v151
    %v174 = vpack.c.b16 %v154, %v153
    %vm195 = vcmask 523264
    %v197 = vsel %vm195, %v27, 0
    %199 = vmatprep.subr.bf16.mxu0 0
    %200 = vmatpush1.bf16.msra.mxu0 %v155
    %201 = vmatprep.subr.bf16.mxu0 0
    %202 = vmatpush1.bf16.msra.mxu0 %v156
    %203 = vmatprep.subr.bf16.mxu0 0
    %204 = vmatpush1.bf16.msra.mxu0 %v157
    %205 = vmatprep.subr.bf16.mxu0 0
    %206 = vmatpush1.bf16.msra.mxu0 %v158
    %207 = vmatprep.subr.bf16.mxu0 0
    %208 = vmatpush1.bf16.msra.mxu0 %v159
    %209 = vmatprep.subr.bf16.mxu0 0
    %210 = vmatpush1.bf16.msra.mxu0 %v160
    %211 = vmatprep.subr.bf16.mxu0 0
    %212 = vmatpush1.bf16.msra.mxu0 %v161
    %213 = vmatprep.subr.bf16.mxu0 0
    %214 = vmatpush1.bf16.msra.mxu0 %v162
    %215 = vmatprep.subr.bf16.mxu0 0
    %216 = vmatpush1.bf16.msra.mxu0 %v163
    %217 = vmatprep.subr.bf16.mxu0 0
    %218 = vmatpush1.bf16.msra.mxu0 %v164
    %219 = vmatprep.subr.bf16.mxu0 0
    %220 = vmatpush1.bf16.msra.mxu0 %v165
    %221 = vmatprep.subr.bf16.mxu0 0
    %222 = vmatpush1.bf16.msra.mxu0 %v166
    %223 = vmatprep.subr.bf16.mxu0 0
    %224 = vmatpush1.bf16.msra.mxu0 %v167
    %225 = vmatprep.subr.bf16.mxu0 0
    %226 = vmatpush1.bf16.msra.mxu0 %v168
    %227 = vmatprep.subr.bf16.mxu0 0
    %228 = vmatpush1.bf16.msra.mxu0 %v169
    %229 = vmatprep.subr.bf16.mxu0 0
    %230 = vmatpush1.bf16.msra.mxu0 %v170
    %231 = vmatprep.mubr.bf16.mxu0 %v26
    %232 = vmatmul.mubr.bf16.gmra.mrb[0].mxu0 %v25
    %v233 = vpop.f32.mrb[0].mxu0
    %v234 = vadd.f32 %v73, %v233
    %v235 = vpop.f32.mrb[0].mxu0
    %v236 = vpop.f32.mrb[0].mxu0
    %v237 = vpop.f32.mrb[0].mxu0
    %238 = vdwg.mxu0
    %239 = vmatprep.subr.bf16.mxu0 0
    %240 = vmatpush1.bf16.msra.mxu0 %v171
    %241 = vmatprep.subr.bf16.mxu0 0
    %242 = vmatpush1.bf16.msra.mxu0 %v172
    %243 = vmatprep.subr.bf16.mxu0 0
    %244 = vmatpush1.bf16.msra.mxu0 %v173
    %245 = vmatprep.subr.bf16.mxu0 0
    %246 = vmatpush1.bf16.msra.mxu0 %v174
    %247 = vmatprep.subr.bf16.mxu0 0
    %248 = vmatpush1.bf16.msra.mxu0 0
    %249 = vmatprep.subr.bf16.mxu0 0
    %250 = vmatpush1.bf16.msra.mxu0 0
    %251 = vmatprep.subr.bf16.mxu0 0
    %252 = vmatpush1.bf16.msra.mxu0 0
    %253 = vmatprep.subr.bf16.mxu0 0
    %254 = vmatpush1.bf16.msra.mxu0 0
    %255 = vmatprep.subr.bf16.mxu0 0
    %256 = vmatpush1.bf16.msra.mxu0 0
    %257 = vmatprep.subr.bf16.mxu0 0
    %258 = vmatpush1.bf16.msra.mxu0 0
    %259 = vmatprep.subr.bf16.mxu0 0
    %260 = vmatpush1.bf16.msra.mxu0 0
    %261 = vmatprep.subr.bf16.mxu0 0
    %262 = vmatpush1.bf16.msra.mxu0 0
    %263 = vmatprep.subr.bf16.mxu0 0
    %264 = vmatpush1.bf16.msra.mxu0 0
    %265 = vmatprep.subr.bf16.mxu0 0
    %266 = vmatpush1.bf16.msra.mxu0 0
    %267 = vmatprep.subr.bf16.mxu0 0
    %268 = vmatpush1.bf16.msra.mxu0 0
    %269 = vmatprep.subr.bf16.mxu0 0
    %270 = vmatpush1.bf16.msra.mxu0 0
    %271 = vmatprep.mubr.bf16.mxu0 0
    %272 = vmatmul.mubr.bf16.gmra.mrb[0].mxu0 %v197
    %v273 = vpop.f32.mrb[0].mxu0
    %v274 = vadd.f32 %v234, %v273
    %v275 = vpop.f32.mrb[0].mxu0
    %v276 = vpop.f32.mrb[0].mxu0
    %v277 = vpop.f32.mrb[0].mxu0
    %278 = vdwg.mxu0
    %v279 = vtanh.pop %v274
    %v280 = vld [vmem:[%s3] sm:$0xff]
    %v281 = vld [vmem:[%s3 + $0x8] sm:$0xff]
    %v282 = vld [vmem:[%s3 + $0x10] sm:$0xff]
    %v283 = vld [vmem:[%s3 + $0x18] sm:$0xff]
    %v284 = vld [vmem:[%s3 + $0x20] sm:$0xff]
    %v285 = vld [vmem:[%s3 + $0x28] sm:$0xff]
    %v286 = vld [vmem:[%s3 + $0x30] sm:$0xff]
    %v287 = vld [vmem:[%s3 + $0x38] sm:$0xff]
    %v288 = vld [vmem:[%s4] sm:$0x1]
    %v290 = vlaneseq
    %v291 = vshrl.u32 %v290, 7
    %v292 = vsub.s32 0, %v291
    %v293 = vrot.slane %v288, %v292
    %v296 = vsel %vm195, %v279, 0
    %298 = vmatprep.subr.mxu0 0.0
    %299 = vmatpush1.msra.mxu0 %v280
    %300 = vmatprep.subr.mxu0 0.0
    %301 = vmatpush1.msra.mxu0 %v281
    %302 = vmatprep.subr.mxu0 0.0
    %303 = vmatpush1.msra.mxu0 %v282
    %304 = vmatprep.subr.mxu0 0.0
    %305 = vmatpush1.msra.mxu0 %v283
    %306 = vmatprep.subr.mxu0 0.0
    %307 = vmatpush1.msra.mxu0 %v284
    %308 = vmatprep.subr.mxu0 0.0
    %309 = vmatpush1.msra.mxu0 %v285
    %310 = vmatprep.subr.mxu0 0.0
    %311 = vmatpush1.msra.mxu0 %v286
    %312 = vmatprep.subr.mxu0 0.0
    %313 = vmatpush1.msra.mxu0 %v287
    %314 = vmatprep.subr.mxu0 0.0
    %315 = vmatpush1.msra.mxu0 0.0
    %316 = vmatprep.subr.mxu0 0.0
    %317 = vmatpush1.msra.mxu0 0.0
    %318 = vmatprep.subr.mxu0 0.0
    %319 = vmatpush1.msra.mxu0 0.0
    %320 = vmatprep.subr.mxu0 0.0
    %321 = vmatpush1.msra.mxu0 0.0
    %322 = vmatprep.subr.mxu0 0.0
    %323 = vmatpush1.msra.mxu0 0.0
    %324 = vmatprep.subr.mxu0 0.0
    %325 = vmatpush1.msra.mxu0 0.0
    %326 = vmatprep.subr.mxu0 0.0
    %327 = vmatpush1.msra.mxu0 0.0
    %328 = vmatprep.subr.mxu0 0.0
    %329 = vmatpush1.msra.mxu0 0.0
    %330 = vmatprep.subr.mxu0 0.0
    %331 = vmatpush1.msra.mxu0 0.0
    %332 = vmatprep.subr.mxu0 0.0
    %333 = vmatpush1.msra.mxu0 0.0
    %334 = vmatprep.subr.mxu0 0.0
    %335 = vmatpush1.msra.mxu0 0.0
    %336 = vmatprep.subr.mxu0 0.0
    %337 = vmatpush1.msra.mxu0 0.0
    %338 = vmatprep.subr.mxu0 0.0
    %339 = vmatpush1.msra.mxu0 0.0
    %340 = vmatprep.subr.mxu0 0.0
    %341 = vmatpush1.msra.mxu0 0.0
    %342 = vmatprep.subr.mxu0 0.0
    %343 = vmatpush1.msra.mxu0 0.0
    %344 = vmatprep.subr.mxu0 0.0
    %345 = vmatpush1.msra.mxu0 0.0
    %346 = vmatprep.subr.mxu0 0.0
    %347 = vmatpush1.msra.mxu0 0.0
    %348 = vmatprep.subr.mxu0 0.0
    %349 = vmatpush1.msra.mxu0 0.0
    %350 = vmatprep.subr.mxu0 0.0
    %351 = vmatpush1.msra.mxu0 0.0
    %352 = vmatprep.subr.mxu0 0.0
    %353 = vmatpush1.msra.mxu0 0.0
    %354 = vmatprep.subr.mxu0 0.0
    %355 = vmatpush1.msra.mxu0 0.0
    %356 = vmatprep.subr.mxu0 0.0
    %357 = vmatpush1.msra.mxu0 0.0
    %358 = vmatprep.subr.mxu0 0.0
    %359 = vmatpush1.msra.mxu0 0.0
    %360 = vmatprep.subr.mxu0 0.0
    %361 = vmatpush1.msra.mxu0 0.0
    %362 = vmatprep.mubr.f32.mxu0 0.0
    %363 = vmatmul.mubr.f32.gmra.mrb[0].mxu0 %v296
    %v364 = vpop.f32.mrb[0].mxu0
    %v365 = vadd.f32 %v293, %v364
    %v366 = vpop.f32.mrb[0].mxu0
    %367 = vdwg.mxu0
    %v368 = vtanh.pop %v365
    %vm369 = vcmask 80896
    %370 = vst.msk [vmem:[#allocation2] sm:$0xff] %vm369, %v368
    // Predicated region
    $region22: #{tpu_custom_call.1} parent=1 // pred_check
      _
    $region23: #{tpu_custom_call.1} parent=1 // pred_check_branch
      %372 = sbr.rel (0) target = $region25
    $region24: #{tpu_custom_call.1} parent=1 // pred_region
      %s374 = ssub.s32 128, 128
      %375 = vsyncadd [#allocation3], %s374
      %s377 = sshll.u32 [#allocation2], 4
      %s378 = int_to_ptr.vmem [resolvable:$true] %s377
      %380 = dma.vmem_to_hbm [thread:$0]  %s378, 128, %s5, [#allocation3]
    $region25: #{tpu_custom_call.1} parent=1 // pred_fallthru
      _
    // Predicated region
    $region26: #{tpu_custom_call.1} parent=1 // pred_check
      _
    $region27: #{tpu_custom_call.1} parent=1 // pred_check_branch
      %382 = sbr.rel (0) target = $region29
    $region28: #{tpu_custom_call.1} parent=1 // pred_region
      %383 = dma.done [#allocation3], 128
    $region29: #{tpu_custom_call.1} parent=1 // pred_fallthru
      _
    %384 = vsyncpa [#allocation3], 1

</llo_original>
